<compile_context>
chip_gen: v6e
topology: v6e:2x2x1
jax: 0.10.0
libtpu: 0.0.40
codegen_flags: <defaults>
</compile_context>

<pallas_src>
import functools

import jax
import jax.numpy as jnp
from jax.experimental import pallas as pl
from jax.experimental.pallas import tpu as pltpu

# Row-tile alignment: 32 covers f32 (8 sublanes/vreg), bf16 (16) and
# int8/fp8 (32) sublane packing so non-tail loads/stores stay unmasked.
_ROW_ALIGN = 32
_MIB = 1024 * 1024


@functools.lru_cache(maxsize=None)
def _tpu_vmem_and_cores():
    """(per-core VMEM bytes, TensorCores per chip) with conservative fallbacks."""
    vmem = 64 * _MIB            # conservative default (v7x-sized)
    cores = None
    try:
        info = pltpu.get_tpu_info()
        vmem = int(info.vmem_capacity_bytes)
        for attr in ("num_cores", "cores_per_chip", "num_tensorcores", "core_count"):
            if hasattr(info, attr):
                try:
                    cores = int(getattr(info, attr))
                    break
                except Exception:
                    cores = None
    except Exception:
        pass
    if not cores or cores < 1:
        # Heuristic: v7x exposes 64 MiB VMEM per TensorCore and has 2 TCs per
        # chip; v5e/v6e expose 128 MiB with a single TC.
        cores = 2 if vmem <= 64 * _MIB else 1
    return vmem, cores


def _rmsnorm_kernel(x_ref, w_ref, o_ref, *, eps):
    # x_ref: (ROW_TILE, H) tile of the input, w_ref: (1, H) weight row.
    input_dtype = x_ref.dtype
    x = x_ref[...].astype(jnp.float32)                    # .to(float32)
    variance = jnp.mean(x * x, axis=-1, keepdims=True)    # pow(2).mean(-1)
    x = x * jax.lax.rsqrt(variance + eps)                 # * rsqrt(var + eps)
    # weight * hidden_states.to(input_dtype): keep torch's double-round
    # semantics (cast back to input dtype BEFORE the weight multiply).
    o_ref[...] = (w_ref[...] * x.astype(input_dtype)).astype(o_ref.dtype)


def _choose_row_tile(rows, hidden, in_itemsize, out_itemsize,
                     budget_bytes, min_blocks, align=_ROW_ALIGN):
    """Largest row tile whose VMEM footprint fits `budget_bytes`."""
    # Per-row footprint: double-buffered input + output pipeline buffers PLUS
    # the kernel's single-buffered intermediates (f32 upcast / normalized copy
    # ~8 B/elem and the cast-back temp).  Previously only the pipeline buffers
    # were counted, which could overflow v7x's 64 MiB for bf16 inputs.
    per_row = hidden * (2 * (in_itemsize + out_itemsize) + 8 + in_itemsize)
    max_rows = max(align, (budget_bytes // per_row) // align * align)
    # Forced split: give v7x's two TensorCores >= 2 balanced blocks each so the
    # parallel row axis shards evenly and each TC's pipeline can overlap DMA
    # with compute -- but only when every block keeps >= ~512 rows.  Single-TC
    # chips (v5e/v6e) keep the single biggest tile (min_blocks == 1).
    if min_blocks > 1 and rows >= min_blocks * 512:
        split = pl.cdiv(pl.cdiv(rows, min_blocks), align) * align
        max_rows = min(max_rows, split)
    if rows <= max_rows:
        return rows            # single (full-extent) block: always a legal shape
    return max_rows


def mamba_rmsnorm(hidden_states, weight, eps=1e-6, *, row_tile=None,
                  vmem_limit_bytes=None):
    """RMSNorm over the last axis, matching MambaRMSNorm.forward exactly."""
    orig_shape = hidden_states.shape
    hidden = orig_shape[-1]
    x2d = hidden_states.reshape(-1, hidden)
    rows = x2d.shape[0]

    out_dtype = jnp.promote_types(hidden_states.dtype, weight.dtype)

    vmem_capacity, num_cores = _tpu_vmem_and_cores()
    if vmem_limit_bytes is None:
        # ~85% of per-core VMEM: ~108 MiB on 128 MiB parts (v5e/v6e),
        # ~54 MiB on v7x's 64 MiB, leaving headroom for Mosaic scratch.
        vmem_limit_bytes = int(vmem_capacity * 0.85)
    if row_tile is None:
        tile_budget = int(vmem_capacity * 0.62)   # ~80 MiB v5e/v6e, ~40 MiB v7x
        row_tile = _choose_row_tile(
            rows, hidden,
            jnp.dtype(hidden_states.dtype).itemsize,
            jnp.dtype(out_dtype).itemsize,
            tile_budget,
            min_blocks=2 * num_cores if num_cores > 1 else 1,
        )

    num_tiles = pl.cdiv(rows, row_tile)
    w2d = weight.reshape(1, hidden)

    out = pl.pallas_call(
        functools.partial(_rmsnorm_kernel, eps=eps),
        out_shape=jax.ShapeDtypeStruct((rows, hidden), out_dtype),
        grid_spec=pltpu.PrefetchScalarGridSpec(
            num_scalar_prefetch=0,
            grid=(num_tiles,),
            in_specs=[
                pl.BlockSpec((row_tile, hidden), lambda i: (i, 0)),
                # Constant-index weight block: DMA'd once, reused every step.
                # (Left default-buffered: single-buffering it saves only
                # ~64*H bytes and is not worth any lowering risk.)
                pl.BlockSpec((1, hidden), lambda i: (0, 0)),
            ],
            out_specs=pl.BlockSpec((row_tile, hidden), lambda i: (i, 0)),
        ),
        compiler_params=pltpu.CompilerParams(
            dimension_semantics=("parallel",),
            vmem_limit_bytes=vmem_limit_bytes,
        ),
    )(x2d, w2d)

    return out.reshape(orig_shape[:-1] + (hidden,))


def _reference(x, weight, eps):
    xf = x.astype(jnp.float32)
    var = jnp.mean(xf * xf, axis=-1, keepdims=True)
    return weight * (xf * jax.lax.rsqrt(var + eps)).astype(x.dtype)


if __name__ == "__main__":
    # Small shapes consistent with the module: (batch=2, seq=8, hidden=128).
    batch, seq, hidden = 2, 8, 128
    key = jax.random.PRNGKey(0)
    x = jax.random.normal(key, (batch, seq, hidden), dtype=jnp.float32)

    # Deterministic parameter init: nn.Parameter(torch.ones(hidden_size)).
    weight = jnp.ones((hidden,), dtype=jnp.float32)
    eps = 1e-6

    out = mamba_rmsnorm(x, weight, eps)
    jax.block_until_ready(out)
    ref = _reference(x, weight, eps)
    assert out.shape == ref.shape and out.dtype == ref.dtype
    assert jnp.allclose(out, ref, atol=1e-5, rtol=1e-5)

    # Ragged-grid path (no wrapper pad/slice): bf16 activations, 21 rows with a
    # forced 16-row tile -> last block is masked on writeback.
    x_odd = jax.random.normal(jax.random.PRNGKey(1), (3, 7, hidden),
                              dtype=jnp.bfloat16)
    out_odd = mamba_rmsnorm(x_odd, weight, eps, row_tile=16)
    jax.block_until_ready(out_odd)
    ref_odd = _reference(x_odd, weight, eps)
    assert out_odd.shape == ref_odd.shape and out_odd.dtype == ref_odd.dtype
    assert jnp.allclose(out_odd, ref_odd, atol=1e-2, rtol=1e-2)

    # Non-128 hidden width (block equals the full hidden extent, so it is a
    # legal -- if lane-masked -- store path); Mamba hidden sizes are normally
    # 128-aligned so this is just a correctness check.
    x_narrow = jax.random.normal(jax.random.PRNGKey(2), (5, 3, 96),
                                 dtype=jnp.float32)
    w_narrow = jnp.ones((96,), dtype=jnp.float32)
    out_narrow = mamba_rmsnorm(x_narrow, w_narrow, eps)
    jax.block_until_ready(out_narrow)
    ref_narrow = _reference(x_narrow, w_narrow, eps)
    assert jnp.allclose(out_narrow, ref_narrow, atol=1e-5, rtol=1e-5)

    print("KERNEL_OK")
</pallas_src>

<mosaic_0001>
module attributes {stable_mosaic.version = 11 : i64} {
  func.func @_rmsnorm_kernel(%arg0: i32, %arg1: memref<16x128xf32, #tpu.memory_space<vmem>>, %arg2: memref<1x128xf32, #tpu.memory_space<vmem>>, %arg3: memref<16x128xf32, #tpu.memory_space<vmem>>) attributes {dimension_semantics = [#tpu.dimension_semantics<parallel>], iteration_bounds = array<i64: 1>, scalar_prefetch = 0 : i64, scratch_operands = 0 : i64, tpu.core_type = #tpu.core_type<tc>, window_params = [{transform_indices = @transform_0, window_bounds = array<i64: 16, 128>}, {pipeline_mode = #tpu.pipeline_mode<synchronous>, transform_indices = @transform_1, window_bounds = array<i64: 1, 128>}, {transform_indices = @transform_2, window_bounds = array<i64: 16, 128>}]} {
    %c0 = arith.constant 0 : index
    %c0_0 = arith.constant 0 : index
    %0 = vector.load %arg1[%c0, %c0_0] : memref<16x128xf32, #tpu.memory_space<vmem>>, vector<16x128xf32>
    %1 = arith.mulf %0, %0 : vector<16x128xf32>
    %cst = arith.constant dense<0.000000e+00> : vector<16xf32>
    %2 = vector.multi_reduction <add>, %1, %cst [1] : vector<16x128xf32> to vector<16xf32>
    %3 = vector.shape_cast %2 : vector<16xf32> to vector<16x1xf32>
    %cst_1 = arith.constant 1.280000e+02 : f32
    %4 = vector.broadcast %cst_1 : f32 to vector<16x1xf32>
    %5 = arith.divf %3, %4 : vector<16x1xf32>
    %cst_2 = arith.constant 9.99999997E-7 : f32
    %6 = vector.broadcast %cst_2 : f32 to vector<16x1xf32>
    %7 = arith.addf %5, %6 : vector<16x1xf32>
    %8 = math.rsqrt %7 : vector<16x1xf32>
    %9 = vector.broadcast %8 : vector<16x1xf32> to vector<16x128xf32>
    %10 = arith.mulf %0, %9 : vector<16x128xf32>
    %c0_3 = arith.constant 0 : index
    %c0_4 = arith.constant 0 : index
    %11 = vector.load %arg2[%c0_3, %c0_4] : memref<1x128xf32, #tpu.memory_space<vmem>>, vector<1x128xf32>
    %12 = vector.broadcast %11 : vector<1x128xf32> to vector<16x128xf32>
    %13 = arith.mulf %12, %10 : vector<16x128xf32>
    %c0_5 = arith.constant 0 : index
    %c0_6 = arith.constant 0 : index
    %14 = vector.load %arg3[%c0_5, %c0_6] : memref<16x128xf32, #tpu.memory_space<vmem>>, vector<16x128xf32>
    tpu.vector_store %arg3[%c0_5, %c0_6], %13 {strides = array<i32>} : memref<16x128xf32, #tpu.memory_space<vmem>>, vector<16x128xf32>,
    return
  }
  func.func @transform_0(%arg0: i32) -> (i32, i32) {
    %c0_i32 = arith.constant 0 : i32
    %c0_i32_0 = arith.constant 0 : i32
    return %arg0, %c0_i32 : i32, i32
  }
  func.func @transform_1(%arg0: i32) -> (i32, i32) {
    %c0_i32 = arith.constant 0 : i32
    %c0_i32_0 = arith.constant 0 : i32
    %c0_i32_1 = arith.constant 0 : i32
    return %c0_i32, %c0_i32_0 : i32, i32
  }
  func.func @transform_2(%arg0: i32) -> (i32, i32) {
    %c0_i32 = arith.constant 0 : i32
    %c0_i32_0 = arith.constant 0 : i32
    return %arg0, %c0_i32 : i32, i32
  }
}

</mosaic_0001>

<llo_original>
// kernel: tpu_custom_call.1
$region0: #{tpu_custom_call.1}
  #allocation0 [shape = 'u32[]', space=smem, size = 0x4, offset = 0x4, fixed_abs, tag = 'smem constant byte address 0x4 - core index']
  #allocation1 [shape = 'u32[144,128]{1,0:T(1,128)}', space=vmem, size = 0x12000, scoped, tag = 'internal scratch']
  %s0 = inlined_call_operand.hbm [shape: f32[16,128], index: 0, kind: input, shape index: {}]
  %s1 = inlined_call_operand.vmem [shape: f32[1,128], index: 1, kind: input, shape index: {}]
  %s2 = inlined_call_operand.hbm [shape: f32[16,128], index: 2, kind: output, shape index: {}]
  %s3 = sld [smem:[#allocation0]]
  $region22: #{tpu_custom_call.1} parent=0
    _
  %s5 = ssub.s32 1, %s3
  %s6 = scalar_select 0, %s5, %s3
  $region1: #{tpu_custom_call.1} parent=0
    #allocation2 [shape = 'u8[8192]{0}', space=vmem, size = 0x2000, scoped, tag = 'input window, operand 0, single buffered']
    #allocation3 [shape = 's32[1]{0}', space=sflag, size = 0x4, scoped, tag = 'scoped memory for tpu_custom_call.1']
    #allocation4 [shape = 's32[1]{0}', space=sflag, size = 0x4, scoped, tag = 'scoped memory for tpu_custom_call.1']
    #allocation5 [shape = 'u8[8192]{0}', space=vmem, size = 0x2000, scoped, tag = 'output window, operand 0, single buffered']
    %7 = vsyncpa [#allocation3], 0
    %8 = vsyncpa [#allocation4], 0
    // Predicated region
    $region2: #{tpu_custom_call.1} parent=1 // pred_check
      _
    $region3: #{tpu_custom_call.1} parent=1 // pred_check_branch
      %10 = sbr.rel (0) target = $region5
    $region4: #{tpu_custom_call.1} parent=1 // pred_region
      %s12 = ssub.s32 256, 256
      %13 = vsyncadd [#allocation3], %s12
      %s14 = sshll.u32 [#allocation2], 4
      %s15 = int_to_ptr.vmem [resolvable:$true] %s14
      %20 = dma.hbm_to_vmem [thread:$0]  %s0, 256, %s15, [#allocation3], 128, 128, 8
    $region5: #{tpu_custom_call.1} parent=1 // pred_fallthru
      _
    // Predicated region
    $region6: #{tpu_custom_call.1} parent=1 // pred_check
      _
    $region7: #{tpu_custom_call.1} parent=1 // pred_check_branch
      %22 = sbr.rel (0) target = $region9
    $region8: #{tpu_custom_call.1} parent=1 // pred_region
      _
    $region9: #{tpu_custom_call.1} parent=1 // pred_fallthru
      _
    // Predicated region
    $region10: #{tpu_custom_call.1} parent=1 // pred_check
      _
    $region11: #{tpu_custom_call.1} parent=1 // pred_check_branch
      %24 = sbr.rel (0) target = $region13
    $region12: #{tpu_custom_call.1} parent=1 // pred_region
      %25 = dma.done [#allocation3], 256
    $region13: #{tpu_custom_call.1} parent=1 // pred_fallthru
      _
    %v26 = vld [vmem:[#allocation2] sm:$0xff]
    %v27 = vld [vmem:[#allocation2 + $0x8] sm:$0xff]
    %v28 = vmul.f32 %v26, %v26
    %v29 = vmul.f32 %v27, %v27
    %30 = vadd.xlane.f32.xlu0 %v28
    %v31 = vpop.xlane.xlu0 %30
    %32 = vadd.xlane.f32.xlu0 %v29
    %v33 = vpop.xlane.xlu0 %32
    %v34 = vrcp.pop 128.0
    %v35 = vmul.f32 %v31, %v34
    %v36 = vmul.f32 %v33, %v34
    %v37 = vadd.f32 %v35, 1e-06
    %v38 = vadd.f32 %v36, 1e-06
    %v39 = vrsqrt.pop %v37
    %v40 = vrsqrt.pop %v38
    %v41 = vmul.f32 %v26, %v39
    %v42 = vmul.f32 %v27, %v40
    %v43 = vld [vmem:[%s1] sm:$0x1]
    %v45 = vlaneseq
    %v46 = vshrl.u32 %v45, 7
    %v47 = vsub.s32 0, %v46
    %v48 = vrot.slane %v43, %v47
    %v50 = vmul.f32 %v48, %v41
    %v51 = vmul.f32 %v48, %v42
    %52 = vst [vmem:[#allocation5] sm:$0xff] %v50
    %53 = vst [vmem:[#allocation5 + $0x8] sm:$0xff] %v51
    // Predicated region
    $region14: #{tpu_custom_call.1} parent=1 // pred_check
      _
    $region15: #{tpu_custom_call.1} parent=1 // pred_check_branch
      %55 = sbr.rel (0) target = $region17
    $region16: #{tpu_custom_call.1} parent=1 // pred_region
      %s57 = ssub.s32 256, 256
      %58 = vsyncadd [#allocation4], %s57
      %s59 = sshll.u32 [#allocation5], 4
      %s60 = int_to_ptr.vmem [resolvable:$true] %s59
      %65 = dma.vmem_to_hbm [thread:$0]  %s60, 256, %s2, [#allocation4], 128, 128, 8
    $region17: #{tpu_custom_call.1} parent=1 // pred_fallthru
      _
    // Predicated region
    $region18: #{tpu_custom_call.1} parent=1 // pred_check
      _
    $region19: #{tpu_custom_call.1} parent=1 // pred_check_branch
      %67 = sbr.rel (0) target = $region21
    $region20: #{tpu_custom_call.1} parent=1 // pred_region
      %68 = dma.done [#allocation4], 256
    $region21: #{tpu_custom_call.1} parent=1 // pred_fallthru
      _
    %69 = vsyncpa [#allocation3], 1
    %70 = vsyncpa [#allocation4], 1

</llo_original>
